<compile_context>
chip_gen: v7x
topology: tpu7x:2x2x1
jax: 0.10.0
libtpu: 0.0.40
codegen_flags: <defaults>
</compile_context>

<pallas_src>
import jax
import jax.numpy as jnp
from jax import lax
from jax.experimental import pallas as pl
from jax.experimental.pallas import tpu as pltpu


def _make_pc_encoder_kernel(n_points):
    """n_points: true (unpadded) number of points per cloud, baked in statically."""

    def kernel(pc_ref, w1_ref, b1_ref, w2_ref, b2_ref, out_ref):
        # pc_ref:  (TN, 3)  f32   current point tile of the current batch element
        # w1_ref:  (3, H)   f32   layer-1 weight (resident)
        # b1_ref:  (1, H)   f32
        # w2_ref:  (H, D)   bf16  layer-2 weight (resident)
        # b2_ref:  (1, D)   f32
        # out_ref: (1, D)   f32   per-cloud pooled feature (running-max accumulator)
        n = pl.program_id(1)
        tn = pc_ref.shape[0]

        pc = pc_ref[...]                                  # (TN, 3)
        w1 = w1_ref[...]                                  # (3, H)

        # --- layer 1 on the VPU: K = 3 is far too shallow for the MXU ---
        h = (pc[:, 0:1] * w1[0:1, :]
             + pc[:, 1:2] * w1[1:2, :]
             + pc[:, 2:3] * w1[2:3, :]
             + b1_ref[...])                               # (TN, H) f32
        h = jnp.maximum(h, 0.0)

        # --- layer 2 on the MXU: canonical (TN,H)@(H,D), bf16 in / f32 accumulate ---
        y = jnp.dot(h.astype(jnp.bfloat16), w2_ref[...],
                    preferred_element_type=jnp.float32) + b2_ref[...]   # (TN, D) f32

        # --- mask padded rows so they cannot win the max pool ---
        row = lax.broadcasted_iota(jnp.int32, (tn, 1), 0) + n * tn
        y = jnp.where(row < n_points, y, -jnp.inf)

        tile_max = jnp.max(y, axis=0, keepdims=True)      # (1, D)

        @pl.when(n == 0)
        def _():
            out_ref[...] = tile_max

        @pl.when(n > 0)
        def _():
            out_ref[...] = jnp.maximum(out_ref[...], tile_max)

    return kernel


def prompt_learner_3d(point_cloud, learnable_tokens, w1, b1, w2, b2, *, tile_n=None):
    """point_cloud: (B, N, 3) or (B, N*3); returns combined (B, L+1, D) float32."""
    B = point_cloud.shape[0]
    if point_cloud.ndim == 2:                             # matches point_cloud.view(B, -1, 3)
        point_cloud = point_cloud.reshape(B, -1, 3)
    point_cloud = point_cloud.astype(jnp.float32)
    N = point_cloud.shape[1]
    L, D = learnable_tokens.shape
    H = w1.shape[1]

    if tile_n is None:
        # Small default so the demo exercises multi-tile pipelining; production
        # should use 512-2048 (see TODO at top) to amortize per-step overhead.
        tile_n = N if N <= 128 else 128
    num_tiles = (N + tile_n - 1) // tile_n
    n_pad = num_tiles * tile_n
    if n_pad != N:
        point_cloud = jnp.pad(point_cloud, ((0, 0), (0, n_pad - N), (0, 0)))

    w1f = w1.astype(jnp.float32).reshape(3, H)
    b1f = b1.astype(jnp.float32).reshape(1, H)
    w2b = w2.astype(jnp.bfloat16).reshape(H, D)           # bf16 into the MXU
    b2f = b2.astype(jnp.float32).reshape(1, D)

    kernel = _make_pc_encoder_kernel(N)

    pc_feat = pl.pallas_call(
        kernel,
        out_shape=jax.ShapeDtypeStruct((B, 1, D), jnp.float32),
        grid_spec=pltpu.PrefetchScalarGridSpec(
            num_scalar_prefetch=0,
            grid=(B, num_tiles),                          # reduction (N-tile) axis last
            in_specs=[
                pl.BlockSpec((None, tile_n, 3), lambda b, n: (b, n, 0)),  # point tile
                pl.BlockSpec((3, H), lambda b, n: (0, 0)),                # W1 (resident)
                pl.BlockSpec((1, H), lambda b, n: (0, 0)),                # b1 (resident)
                pl.BlockSpec((H, D), lambda b, n: (0, 0)),                # W2 bf16 (resident)
                pl.BlockSpec((1, D), lambda b, n: (0, 0)),                # b2 (resident)
            ],
            out_specs=pl.BlockSpec((None, 1, D), lambda b, n: (b, 0, 0)),
        ),
        compiler_params=pltpu.CompilerParams(
            dimension_semantics=("parallel", "arbitrary"),
            vmem_limit_bytes=32 * 1024 * 1024,
        ),
    )(point_cloud, w1f, b1f, w2b, b2f)                    # (B, 1, D)

    # Batch-invariant token broadcast + concat stay outside the kernel (free XLA fusion).
    context = jnp.broadcast_to(learnable_tokens.astype(jnp.float32)[None], (B, L, D))
    return jnp.concatenate([context, pc_feat], axis=1)    # (B, L+1, D)


def reference(point_cloud, learnable_tokens, w1, b1, w2, b2):
    B = point_cloud.shape[0]
    if point_cloud.ndim == 2:
        point_cloud = point_cloud.reshape(B, -1, 3)
    context = jnp.broadcast_to(learnable_tokens[None], (B,) + learnable_tokens.shape)
    h = jnp.maximum(jnp.einsum('bnc,ch->bnh', point_cloud, w1) + b1, 0.0)
    y = jnp.einsum('bnh,hd->bnd', h, w2) + b2
    pc_feat = jnp.max(y, axis=1, keepdims=True)           # (B, 1, D)
    return jnp.concatenate([context, pc_feat], axis=1)


if __name__ == "__main__":
    # Small, module-consistent shapes (N chosen so the grid has multiple N-tiles).
    B, N = 2, 512           # batch, number of points
    L = 8                   # context_length
    D = 32                  # pc_feat_dims
    H = 32                  # hidden width of synthetic point encoder

    key = jax.random.PRNGKey(0)
    k_pc, k_tok, k_emb, k_w1, k_b1, k_w2, k_b2 = jax.random.split(key, 7)

    point_cloud = jax.random.normal(k_pc, (B, N, 3), dtype=jnp.float32)

    # nn.Parameter(torch.randn(context_length, pc_feat_dims)) equivalents:
    learnable_tokens = jax.random.normal(k_tok, (L, D), dtype=jnp.float32)
    token_embedding = jax.random.normal(k_emb, (L, D), dtype=jnp.float32)  # unused in forward (as in PyTorch)

    # Deterministic synthetic point-encoder weights.
    w1 = jax.random.normal(k_w1, (3, H), dtype=jnp.float32) * 0.1
    b1 = jax.random.normal(k_b1, (1, H), dtype=jnp.float32) * 0.1
    w2 = jax.random.normal(k_w2, (H, D), dtype=jnp.float32) * 0.1
    b2 = jax.random.normal(k_b2, (1, D), dtype=jnp.float32) * 0.1

    combined = prompt_learner_3d(point_cloud, learnable_tokens, w1, b1, w2, b2, tile_n=128)
    combined = jax.block_until_ready(combined)

    ref = reference(point_cloud, learnable_tokens, w1, b1, w2, b2)
    assert combined.shape == (B, L + 1, D), combined.shape
    # bf16 MXU operands (f32 accumulation) -> slightly looser tolerance vs. f32 reference.
    assert jnp.allclose(combined, ref, atol=1e-2, rtol=1e-2), "mismatch vs reference"

    print("KERNEL_OK")
</pallas_src>

<mosaic_0001>
module attributes {stable_mosaic.version = 11 : i64} {
  func.func @kernel(%arg0: i32, %arg1: i32, %arg2: memref<1x128x3xf32, #tpu.memory_space<vmem>>, %arg3: memref<3x32xf32, #tpu.memory_space<vmem>>, %arg4: memref<1x32xf32, #tpu.memory_space<vmem>>, %arg5: memref<32x32xbf16, #tpu.memory_space<vmem>>, %arg6: memref<1x32xf32, #tpu.memory_space<vmem>>, %arg7: memref<1x1x32xf32, #tpu.memory_space<vmem>>) attributes {dimension_semantics = [#tpu.dimension_semantics<parallel>, #tpu.dimension_semantics<arbitrary>], iteration_bounds = array<i64: 2, 4>, scalar_prefetch = 0 : i64, scratch_operands = 0 : i64, tpu.core_type = #tpu.core_type<tc>, window_params = [{transform_indices = @transform_0, window_bounds = array<i64: 1, 128, 3>}, {pipeline_mode = #tpu.pipeline_mode<synchronous>, transform_indices = @transform_1, window_bounds = array<i64: 3, 32>}, {pipeline_mode = #tpu.pipeline_mode<synchronous>, transform_indices = @transform_2, window_bounds = array<i64: 1, 32>}, {pipeline_mode = #tpu.pipeline_mode<synchronous>, transform_indices = @transform_3, window_bounds = array<i64: 32, 32>}, {pipeline_mode = #tpu.pipeline_mode<synchronous>, transform_indices = @transform_4, window_bounds = array<i64: 1, 32>}, {transform_indices = @transform_5, window_bounds = array<i64: 1, 1, 32>}]} {
    %c0 = arith.constant 0 : index
    %c0_0 = arith.constant 0 : index
    %c0_1 = arith.constant 0 : index
    %0 = vector.load %arg2[%c0, %c0_0, %c0_1] : memref<1x128x3xf32, #tpu.memory_space<vmem>>, vector<1x128x3xf32>
    %1 = vector.shape_cast %0 : vector<1x128x3xf32> to vector<128x3xf32>
    %c0_2 = arith.constant 0 : index
    %c0_3 = arith.constant 0 : index
    %2 = vector.load %arg3[%c0_2, %c0_3] : memref<3x32xf32, #tpu.memory_space<vmem>>, vector<3x32xf32>
    %3 = vector.extract_strided_slice %1 {offsets = [0, 0], sizes = [128, 1], strides = [1, 1]} : vector<128x3xf32> to vector<128x1xf32>
    %4 = vector.extract_strided_slice %2 {offsets = [0, 0], sizes = [1, 32], strides = [1, 1]} : vector<3x32xf32> to vector<1x32xf32>
    %5 = vector.broadcast %3 : vector<128x1xf32> to vector<128x32xf32>
    %6 = vector.broadcast %4 : vector<1x32xf32> to vector<128x32xf32>
    %7 = arith.mulf %5, %6 : vector<128x32xf32>
    %8 = vector.extract_strided_slice %1 {offsets = [0, 1], sizes = [128, 1], strides = [1, 1]} : vector<128x3xf32> to vector<128x1xf32>
    %9 = vector.extract_strided_slice %2 {offsets = [1, 0], sizes = [1, 32], strides = [1, 1]} : vector<3x32xf32> to vector<1x32xf32>
    %10 = vector.broadcast %8 : vector<128x1xf32> to vector<128x32xf32>
    %11 = vector.broadcast %9 : vector<1x32xf32> to vector<128x32xf32>
    %12 = arith.mulf %10, %11 : vector<128x32xf32>
    %13 = arith.addf %7, %12 : vector<128x32xf32>
    %14 = vector.extract_strided_slice %1 {offsets = [0, 2], sizes = [128, 1], strides = [1, 1]} : vector<128x3xf32> to vector<128x1xf32>
    %15 = vector.extract_strided_slice %2 {offsets = [2, 0], sizes = [1, 32], strides = [1, 1]} : vector<3x32xf32> to vector<1x32xf32>
    %16 = vector.broadcast %14 : vector<128x1xf32> to vector<128x32xf32>
    %17 = vector.broadcast %15 : vector<1x32xf32> to vector<128x32xf32>
    %18 = arith.mulf %16, %17 : vector<128x32xf32>
    %19 = arith.addf %13, %18 : vector<128x32xf32>
    %c0_4 = arith.constant 0 : index
    %c0_5 = arith.constant 0 : index
    %20 = vector.load %arg4[%c0_4, %c0_5] : memref<1x32xf32, #tpu.memory_space<vmem>>, vector<1x32xf32>
    %21 = vector.broadcast %20 : vector<1x32xf32> to vector<128x32xf32>
    %22 = arith.addf %19, %21 : vector<128x32xf32>
    %cst = arith.constant 0.000000e+00 : f32
    %23 = vector.broadcast %cst : f32 to vector<128x32xf32>
    %24 = arith.maximumf %22, %23 : vector<128x32xf32>
    %25 = arith.truncf %24 : vector<128x32xf32> to vector<128x32xbf16>
    %c0_6 = arith.constant 0 : index
    %c0_7 = arith.constant 0 : index
    %26 = vector.load %arg5[%c0_6, %c0_7] : memref<32x32xbf16, #tpu.memory_space<vmem>>, vector<32x32xbf16>
    %cst_8 = arith.constant dense<0.000000e+00> : vector<128x32xf32>
    %27 = tpu.matmul %25, %26, %cst_8 {dimension_numbers = #tpu.dot_dimension_numbers<[1], [0], [0], [1], [0, 0, 1, 1], [], []>} : vector<128x32xbf16>, vector<32x32xbf16>, vector<128x32xf32> -> vector<128x32xf32>
    %c0_9 = arith.constant 0 : index
    %c0_10 = arith.constant 0 : index
    %28 = vector.load %arg6[%c0_9, %c0_10] : memref<1x32xf32, #tpu.memory_space<vmem>>, vector<1x32xf32>
    %29 = vector.broadcast %28 : vector<1x32xf32> to vector<128x32xf32>
    %30 = arith.addf %27, %29 : vector<128x32xf32>
    %31 = tpu.iota {dimensions = array<i32: 0>} : vector<128x1xi32>
    %c128_i32 = arith.constant 128 : i32
    %32 = arith.muli %arg1, %c128_i32 : i32
    %33 = vector.broadcast %32 : i32 to vector<128x1xi32>
    %34 = arith.addi %31, %33 : vector<128x1xi32>
    %c512_i32 = arith.constant 512 : i32
    %35 = vector.broadcast %c512_i32 : i32 to vector<128x1xi32>
    %36 = arith.cmpi slt, %34, %35 : vector<128x1xi32>
    %cst_11 = arith.constant 0xFF800000 : f32
    %37 = vector.shape_cast %36 : vector<128x1xi1> to vector<128x1xi1>
    %38 = vector.broadcast %37 : vector<128x1xi1> to vector<128x32xi1>
    %39 = vector.broadcast %cst_11 : f32 to vector<128x32xf32>
    %40 = arith.select %38, %30, %39 : vector<128x32xi1>, vector<128x32xf32>
    %cst_12 = arith.constant dense<0xFF800000> : vector<32xf32>
    %41 = vector.multi_reduction <maximumf>, %40, %cst_12 [0] : vector<128x32xf32> to vector<32xf32>
    %42 = vector.shape_cast %41 : vector<32xf32> to vector<1x32xf32>
    %c0_i32 = arith.constant 0 : i32
    %43 = arith.cmpi eq, %arg1, %c0_i32 : i32
    %44 = arith.extui %43 : i1 to i32
    %c0_i32_13 = arith.constant 0 : i32
    %45 = arith.cmpi ne, %44, %c0_i32_13 : i32
    scf.if %45 {
      %c0_16 = arith.constant 0 : index
      %c0_17 = arith.constant 0 : index
      %c0_18 = arith.constant 0 : index
      %49 = vector.load %arg7[%c0_16, %c0_17, %c0_18] : memref<1x1x32xf32, #tpu.memory_space<vmem>>, vector<1x1x32xf32>
      %50 = vector.shape_cast %49 : vector<1x1x32xf32> to vector<1x32xf32>
      %51 = vector.shape_cast %42 : vector<1x32xf32> to vector<1x1x32xf32>
      tpu.vector_store %arg7[%c0_16, %c0_17, %c0_18], %51 {strides = array<i32>} : memref<1x1x32xf32, #tpu.memory_space<vmem>>, vector<1x1x32xf32>,
    } else {
    }
    %c0_i32_14 = arith.constant 0 : i32
    %46 = arith.cmpi sgt, %arg1, %c0_i32_14 : i32
    %47 = arith.extui %46 : i1 to i32
    %c0_i32_15 = arith.constant 0 : i32
    %48 = arith.cmpi ne, %47, %c0_i32_15 : i32
    scf.if %48 {
      %c0_16 = arith.constant 0 : index
      %c0_17 = arith.constant 0 : index
      %c0_18 = arith.constant 0 : index
      %49 = vector.load %arg7[%c0_16, %c0_17, %c0_18] : memref<1x1x32xf32, #tpu.memory_space<vmem>>, vector<1x1x32xf32>
      %50 = vector.shape_cast %49 : vector<1x1x32xf32> to vector<1x32xf32>
      %51 = arith.maximumf %50, %42 : vector<1x32xf32>
      %c0_19 = arith.constant 0 : index
      %c0_20 = arith.constant 0 : index
      %c0_21 = arith.constant 0 : index
      %52 = vector.load %arg7[%c0_19, %c0_20, %c0_21] : memref<1x1x32xf32, #tpu.memory_space<vmem>>, vector<1x1x32xf32>
      %53 = vector.shape_cast %52 : vector<1x1x32xf32> to vector<1x32xf32>
      %54 = vector.shape_cast %51 : vector<1x32xf32> to vector<1x1x32xf32>
      tpu.vector_store %arg7[%c0_19, %c0_20, %c0_21], %54 {strides = array<i32>} : memref<1x1x32xf32, #tpu.memory_space<vmem>>, vector<1x1x32xf32>,
    } else {
    }
    return
  }
  func.func @transform_0(%arg0: i32, %arg1: i32) -> (i32, i32, i32) {
    %c0_i32 = arith.constant 0 : i32
    %c0_i32_0 = arith.constant 0 : i32
    return %arg0, %arg1, %c0_i32 : i32, i32, i32
  }
  func.func @transform_1(%arg0: i32, %arg1: i32) -> (i32, i32) {
    %c0_i32 = arith.constant 0 : i32
    %c0_i32_0 = arith.constant 0 : i32
    %c0_i32_1 = arith.constant 0 : i32
    return %c0_i32, %c0_i32_0 : i32, i32
  }
  func.func @transform_2(%arg0: i32, %arg1: i32) -> (i32, i32) {
    %c0_i32 = arith.constant 0 : i32
    %c0_i32_0 = arith.constant 0 : i32
    %c0_i32_1 = arith.constant 0 : i32
    return %c0_i32, %c0_i32_0 : i32, i32
  }
  func.func @transform_3(%arg0: i32, %arg1: i32) -> (i32, i32) {
    %c0_i32 = arith.constant 0 : i32
    %c0_i32_0 = arith.constant 0 : i32
    %c0_i32_1 = arith.constant 0 : i32
    return %c0_i32, %c0_i32_0 : i32, i32
  }
  func.func @transform_4(%arg0: i32, %arg1: i32) -> (i32, i32) {
    %c0_i32 = arith.constant 0 : i32
    %c0_i32_0 = arith.constant 0 : i32
    %c0_i32_1 = arith.constant 0 : i32
    return %c0_i32, %c0_i32_0 : i32, i32
  }
  func.func @transform_5(%arg0: i32, %arg1: i32) -> (i32, i32, i32) {
    %c0_i32 = arith.constant 0 : i32
    %c0_i32_0 = arith.constant 0 : i32
    %c0_i32_1 = arith.constant 0 : i32
    return %arg0, %c0_i32, %c0_i32_0 : i32, i32, i32
  }
}

</mosaic_0001>

<llo_original>
// kernel: tpu_custom_call.1
$region0: #{tpu_custom_call.1}
  #allocation0 [shape = 'u32[]', space=smem, size = 0x4, offset = 0x4, fixed_abs, tag = 'smem constant byte address 0x4 - core index']
  #allocation1 [shape = 'u32[144,128]{1,0:T(1,128)}', space=vmem, size = 0x12000, scoped, tag = 'internal scratch']
  %s0 = inlined_call_operand.vmem [shape: f32[2,512,3], index: 0, kind: input, shape index: {}]
  %s1 = inlined_call_operand.vmem [shape: f32[3,32], index: 1, kind: input, shape index: {}]
  %s2 = inlined_call_operand.vmem [shape: f32[1,32], index: 2, kind: input, shape index: {}]
  %s3 = inlined_call_operand.vmem [shape: bf16[32,32], index: 3, kind: input, shape index: {}]
  %s4 = inlined_call_operand.vmem [shape: f32[1,32], index: 4, kind: input, shape index: {}]
  %s5 = inlined_call_operand.hbm [shape: f32[2,1,32], index: 5, kind: output, shape index: {}]
  %s6 = sld [smem:[#allocation0]]
  $region61: #{tpu_custom_call.1} parent=0
    _
  %s8 = ssub.s32 1, %s6
  %s9 = scalar_select 0, %s8, %s6
  $region1: #{tpu_custom_call.1} parent=0
    #allocation2 [shape = 'u8[1024]{0}', space=vmem, size = 0x400, scoped, tag = 'output window, operand 0']
    #allocation3 [shape = 's32[2]{0}', space=sflag, size = 0x8, scoped, tag = 'scoped memory for tpu_custom_call.1']
    %10 = vsyncpa [#allocation3], 0
    %s11 = scalar_lea.sflag [#allocation3], 1
    %12 = vsyncpa %s11, 0
    loop: start=0, step=1, limit=10
    $region2: #{tpu_custom_call.1} parent=1 // loop_pre_header
      _
    $region3: #{tpu_custom_call.1} parent=1 // loop_header
      %s14 = sphi 0, %s18
      %p15 = scmp.ge.s32.totalorder %s14, 10
      %s21 = sphi 0, %s33
      %s22 = sphi 0, %s29
      %s23 = sphi 0, %s21
      %s24 = sphi 0, %s22
      %s25 = sphi 0, %s23
      %s26 = sphi 0, %s24
      %s38 = sphi 0, %s40
      %s41 = sphi 0, %s38
      %s42 = sphi 0, %s41
      %s58 = sphi 0, %s42
      %s62 = sphi 0, %s62
      %s64 = sphi 0, %s62
      %s65 = sphi 0, %s64
      %s79 = sphi 0, %s65
      %s83 = sphi 0, %s83
      %s85 = sphi 0, %s83
      %s86 = sphi 0, %s85
      %s100 = sphi 0, %s86
      %s104 = sphi 0, %s104
      %s106 = sphi 0, %s104
      %s107 = sphi 0, %s106
      %s121 = sphi 0, %s107
      %s125 = sphi 0, %s125
      %s127 = sphi 0, %s125
      %s128 = sphi 0, %s127
      %s142 = sphi 0, %s128
      %s148 = sphi 0, %s150
      %s151 = sphi 0, %s148
      %s152 = sphi 0, %s151
      %s168 = sphi 0, %s152
    $region4: #{tpu_custom_call.1} parent=1 // loop_header_branch
      %17 = sbr.rel (%p15) target = $region8
    $region5: #{tpu_custom_call.1} parent=1 // loop_body
      %s19 = ssub.s32 %s14, 1
      %s20 = ssub.s32 %s14, 2
      %s27 = sadd.s32 1, %s22
      %p28 = scmp.ge.s32.totalorder %s27, 4
      %s29 = scalar_select %p28, 0, %s27
      %s30 = sadd.s32 1, %s21
      %s31 = scalar_select %p28, %s30, %s21
      %p32 = scmp.ge.s32.totalorder %s31, 2
      %s33 = scalar_select %p32, 0, %s31
      %s34 = ssub.s32 %s21, %s33
      %s35 = ssub.s32 %s22, %s29
      %s36 = sor.u32 %s34, %s35
      %p37 = scmp.eq.s32.totalorder %s36, 0
      %s39 = sadd.s32 %s38, 1
      %s40 = scalar_select %p37, %s38, %s39
      %p43 = pneg %p37
      %p44 = scmp.eq.s32.totalorder %s14, 7
      %p45 = por %p43, %p44
      %p46 = scmp.ne.s32.totalorder %s38, %s41
      %p47 = scmp.eq.s32.totalorder %s14, 0
      %p48 = por %p46, %p47
      %p49 = scmp.ne.s32.totalorder %s38, %s41
      %p50 = scmp.eq.s32.totalorder %s19, 7
      %p51 = por %p49, %p50
      %p52 = scmp.ne.s32.totalorder %s41, %s42
      %p53 = scmp.eq.s32.totalorder %s19, 0
      %p54 = por %p52, %p53
      %p55 = scmp.ne.s32.totalorder %s41, %s42
      %p56 = scmp.eq.s32.totalorder %s20, 7
      %p57 = por %p55, %p56
      %p59 = scmp.ne.s32.totalorder %s42, %s58
      %p60 = scmp.eq.s32.totalorder %s20, 0
      %p61 = por %p59, %p60
      %s63 = sadd.s32 %s62, 1
      %p66 = scmp.eq.s32.totalorder %s14, 7
      %p67 = scmp.ne.s32.totalorder %s62, %s64
      %p68 = scmp.eq.s32.totalorder %s14, 0
      %p69 = por %p67, %p68
      %p70 = scmp.ne.s32.totalorder %s62, %s64
      %p71 = scmp.eq.s32.totalorder %s19, 7
      %p72 = por %p70, %p71
      %p73 = scmp.ne.s32.totalorder %s64, %s65
      %p74 = scmp.eq.s32.totalorder %s19, 0
      %p75 = por %p73, %p74
      %p76 = scmp.ne.s32.totalorder %s64, %s65
      %p77 = scmp.eq.s32.totalorder %s20, 7
      %p78 = por %p76, %p77
      %p80 = scmp.ne.s32.totalorder %s65, %s79
      %p81 = scmp.eq.s32.totalorder %s20, 0
      %p82 = por %p80, %p81
      %s84 = sadd.s32 %s83, 1
      %p87 = scmp.eq.s32.totalorder %s14, 7
      %p88 = scmp.ne.s32.totalorder %s83, %s85
      %p89 = scmp.eq.s32.totalorder %s14, 0
      %p90 = por %p88, %p89
      %p91 = scmp.ne.s32.totalorder %s83, %s85
      %p92 = scmp.eq.s32.totalorder %s19, 7
      %p93 = por %p91, %p92
      %p94 = scmp.ne.s32.totalorder %s85, %s86
      %p95 = scmp.eq.s32.totalorder %s19, 0
      %p96 = por %p94, %p95
      %p97 = scmp.ne.s32.totalorder %s85, %s86
      %p98 = scmp.eq.s32.totalorder %s20, 7
      %p99 = por %p97, %p98
      %p101 = scmp.ne.s32.totalorder %s86, %s100
      %p102 = scmp.eq.s32.totalorder %s20, 0
      %p103 = por %p101, %p102
      %s105 = sadd.s32 %s104, 1
      %p108 = scmp.eq.s32.totalorder %s14, 7
      %p109 = scmp.ne.s32.totalorder %s104, %s106
      %p110 = scmp.eq.s32.totalorder %s14, 0
      %p111 = por %p109, %p110
      %p112 = scmp.ne.s32.totalorder %s104, %s106
      %p113 = scmp.eq.s32.totalorder %s19, 7
      %p114 = por %p112, %p113
      %p115 = scmp.ne.s32.totalorder %s106, %s107
      %p116 = scmp.eq.s32.totalorder %s19, 0
      %p117 = por %p115, %p116
      %p118 = scmp.ne.s32.totalorder %s106, %s107
      %p119 = scmp.eq.s32.totalorder %s20, 7
      %p120 = por %p118, %p119
      %p122 = scmp.ne.s32.totalorder %s107, %s121
      %p123 = scmp.eq.s32.totalorder %s20, 0
      %p124 = por %p122, %p123
      %s126 = sadd.s32 %s125, 1
      %p129 = scmp.eq.s32.totalorder %s14, 7
      %p130 = scmp.ne.s32.totalorder %s125, %s127
      %p131 = scmp.eq.s32.totalorder %s14, 0
      %p132 = por %p130, %p131
      %p133 = scmp.ne.s32.totalorder %s125, %s127
      %p134 = scmp.eq.s32.totalorder %s19, 7
      %p135 = por %p133, %p134
      %p136 = scmp.ne.s32.totalorder %s127, %s128
      %p137 = scmp.eq.s32.totalorder %s19, 0
      %p138 = por %p136, %p137
      %p139 = scmp.ne.s32.totalorder %s127, %s128
      %p140 = scmp.eq.s32.totalorder %s20, 7
      %p141 = por %p139, %p140
      %p143 = scmp.ne.s32.totalorder %s128, %s142
      %p144 = scmp.eq.s32.totalorder %s20, 0
      %p145 = por %p143, %p144
      %s146 = ssub.s32 %s21, %s33
      %p147 = scmp.eq.s32.totalorder %s146, 0
      %s149 = sadd.s32 %s148, 1
      %s150 = scalar_select %p147, %s148, %s149
      %p153 = pneg %p147
      %p154 = scmp.eq.s32.totalorder %s14, 7
      %p155 = por %p153, %p154
      %p156 = scmp.ne.s32.totalorder %s148, %s151
      %p157 = scmp.eq.s32.totalorder %s14, 0
      %p158 = por %p156, %p157
      %p159 = scmp.ne.s32.totalorder %s148, %s151
      %p160 = scmp.eq.s32.totalorder %s19, 7
      %p161 = por %p159, %p160
      %p162 = scmp.ne.s32.totalorder %s151, %s152
      %p163 = scmp.eq.s32.totalorder %s19, 0
      %p164 = por %p162, %p163
      %p165 = scmp.ne.s32.totalorder %s151, %s152
      %p166 = scmp.eq.s32.totalorder %s20, 7
      %p167 = por %p165, %p166
      %p169 = scmp.ne.s32.totalorder %s152, %s168
      %p170 = scmp.eq.s32.totalorder %s20, 0
      %p171 = por %p169, %p170
      %p172 = scmp.le.s32.totalorder 1, %s14
      %p173 = scmp.lt.s32.totalorder %s14, 9
      %p174 = pnand %p172, %p173
      %p175 = pneg %p174
      // Predicated region
      $region9: #{tpu_custom_call.1} parent=5 // pred_check
        _
      $region10: #{tpu_custom_call.1} parent=5 // pred_check_branch
        %177 = sbr.rel (%p174) target = $region12
      $region11: #{tpu_custom_call.1} parent=5 // pred_region
        %s178 = ssub.s32 %s14, 1
        // Predicated region
        $region13: #{tpu_custom_call.1} parent=11 // pred_check
          %p179 = pneg %p75
        $region14: #{tpu_custom_call.1} parent=11 // pred_check_branch
          %181 = sbr.rel (%p179) target = $region16
        $region15: #{tpu_custom_call.1} parent=11 // pred_region
          _
        $region16: #{tpu_custom_call.1} parent=11 // pred_fallthru
          _
        // Predicated region
        $region17: #{tpu_custom_call.1} parent=11 // pred_check
          %p182 = pneg %p96
        $region18: #{tpu_custom_call.1} parent=11 // pred_check_branch
          %184 = sbr.rel (%p182) target = $region20
        $region19: #{tpu_custom_call.1} parent=11 // pred_region
          _
        $region20: #{tpu_custom_call.1} parent=11 // pred_fallthru
          _
        // Predicated region
        $region21: #{tpu_custom_call.1} parent=11 // pred_check
          %p185 = pneg %p117
        $region22: #{tpu_custom_call.1} parent=11 // pred_check_branch
          %187 = sbr.rel (%p185) target = $region24
        $region23: #{tpu_custom_call.1} parent=11 // pred_region
          _
        $region24: #{tpu_custom_call.1} parent=11 // pred_fallthru
          _
        // Predicated region
        $region25: #{tpu_custom_call.1} parent=11 // pred_check
          %p188 = pneg %p138
        $region26: #{tpu_custom_call.1} parent=11 // pred_check_branch
          %190 = sbr.rel (%p188) target = $region28
        $region27: #{tpu_custom_call.1} parent=11 // pred_region
          _
        $region28: #{tpu_custom_call.1} parent=11 // pred_fallthru
          _
      $region12: #{tpu_custom_call.1} parent=5 // pred_fallthru
        _
      %p191 = scmp.lt.s32.totalorder %s14, 8
      // Predicated region
      $region29: #{tpu_custom_call.1} parent=5 // pred_check
        %p192 = pneg %p191
      $region30: #{tpu_custom_call.1} parent=5 // pred_check_branch
        %194 = sbr.rel (%p192) target = $region32
      $region31: #{tpu_custom_call.1} parent=5 // pred_region
        // Predicated region
        $region33: #{tpu_custom_call.1} parent=31 // pred_check
          %p195 = pneg %p48
        $region34: #{tpu_custom_call.1} parent=31 // pred_check_branch
          %197 = sbr.rel (%p195) target = $region36
        $region35: #{tpu_custom_call.1} parent=31 // pred_region
          %s198 = smul.u32 16, %s22
          %p199 = scmp.lt.s32.totalorder %s21, 1
          %s200 = scalar_select %p199, %s21, 1
          %p201 = scmp.lt.s32.totalorder %s198, 63
          %s202 = scalar_select %p201, %s198, 63
          %s203 = smul.addr %s200, 64
          %s204 = sadd.s32 %s202, %s203
          %s205 = smul.addr %s204, 8
          %s206 = scalar_lea.vmem %s0, %s205
          %s207 = smul.u32 16, %s22
        $region36: #{tpu_custom_call.1} parent=31 // pred_fallthru
          _
      $region32: #{tpu_custom_call.1} parent=5 // pred_fallthru
        _
      %p208 = scmp.le.s32.totalorder 1, %s14
      %p209 = scmp.lt.s32.totalorder %s14, 9
      %p210 = pnand %p208, %p209
      %p211 = pneg %p210
      // Predicated region
      $region37: #{tpu_custom_call.1} parent=5 // pred_check
        _
      $region38: #{tpu_custom_call.1} parent=5 // pred_check_branch
        %213 = sbr.rel (%p210) target = $region40
      $region39: #{tpu_custom_call.1} parent=5 // pred_region
        %s214 = ssub.s32 %s14, 1
        %s215 = smul.u32 16, %s24
        %p216 = scmp.lt.s32.totalorder %s23, 1
        %s217 = scalar_select %p216, %s23, 1
        %p218 = scmp.lt.s32.totalorder %s215, 63
        %s219 = scalar_select %p218, %s215, 63
        %s220 = smul.addr %s217, 64
        %s221 = sadd.s32 %s219, %s220
        %s222 = smul.addr %s221, 8
        %s223 = scalar_lea.vmem %s0, %s222
        %p224 = pneg %p54
        %p225 = pneg %p51
        %p226 = pneg %p75
        %p227 = pneg %p72
        %p228 = pneg %p96
        %p229 = pneg %p93
        %p230 = pneg %p117
        %p231 = pneg %p114
        %p232 = pneg %p138
        %p233 = pneg %p135
        %p234 = pneg %p164
        %p235 = pneg %p161
        %s236 = sand.u32 %s151, 1
        %s237 = scalar_lea.sflag [#allocation3], %s236
        %s238 = sand.u32 %s151, 1
        %s239 = scalar_lea.vmem [#allocation2], %s238
        %s240 = smul.u32 16, %s24
        %p241 = scmp.lt.s32.totalorder %s23, 1
        %s242 = scalar_select %p241, %s23, 1
        %p243 = scmp.lt.s32.totalorder %s240, 63
        %s244 = scalar_select %p243, %s240, 63
        %s245 = smul.addr %s242, 64
        %s246 = sadd.s32 %s244, %s245
        %s247 = smul.addr %s246, 8
        %s248 = scalar_lea.vmem %s0, %s247
        %s249 = smul.u32 16, %s24
        %v251 = vld [vmem:[%s248] sm:$0xff]
        %v252 = vld [vmem:[%s248 + $0x8] sm:$0xff]
        %v253 = vld [vmem:[%s248 + $0x10] sm:$0xff]
        %v254 = vld [vmem:[%s248 + $0x18] sm:$0xff]
        %v255 = vld [vmem:[%s248 + $0x20] sm:$0xff]
        %v256 = vld [vmem:[%s248 + $0x28] sm:$0xff]
        %v257 = vld [vmem:[%s248 + $0x30] sm:$0xff]
        %v258 = vld [vmem:[%s248 + $0x38] sm:$0xff]
        %v259 = vld [vmem:[%s248 + $0x40] sm:$0xff]
        %v260 = vld [vmem:[%s248 + $0x48] sm:$0xff]
        %v261 = vld [vmem:[%s248 + $0x50] sm:$0xff]
        %v262 = vld [vmem:[%s248 + $0x58] sm:$0xff]
        %v263 = vld [vmem:[%s248 + $0x60] sm:$0xff]
        %v264 = vld [vmem:[%s248 + $0x68] sm:$0xff]
        %v265 = vld [vmem:[%s248 + $0x70] sm:$0xff]
        %v266 = vld [vmem:[%s248 + $0x78] sm:$0xff]
        %v267 = vld [vmem:[%s1] sm:$0x7]
        %269 = vset.pattern.permute.xlu0 0
        %270 = vperm.xlu0 %269, %v251
        %v271 = vpop.permute.xlu0 %270
        %274 = vset.pattern.permute.xlu0 0
        %275 = vperm.xlu0 %274, %v252
        %v276 = vpop.permute.xlu0 %275
        %279 = vset.pattern.permute.xlu0 0
        %280 = vperm.xlu0 %279, %v253
        %v281 = vpop.permute.xlu0 %280
        %284 = vset.pattern.permute.xlu0 0
        %285 = vperm.xlu0 %284, %v254
        %v286 = vpop.permute.xlu0 %285
        %289 = vset.pattern.permute.xlu0 0
        %290 = vperm.xlu0 %289, %v255
        %v291 = vpop.permute.xlu0 %290
        %294 = vset.pattern.permute.xlu0 0
        %295 = vperm.xlu0 %294, %v256
        %v296 = vpop.permute.xlu0 %295
        %299 = vset.pattern.permute.xlu0 0
        %300 = vperm.xlu0 %299, %v257
        %v301 = vpop.permute.xlu0 %300
        %304 = vset.pattern.permute.xlu0 0
        %305 = vperm.xlu0 %304, %v258
        %v306 = vpop.permute.xlu0 %305
        %309 = vset.pattern.permute.xlu0 0
        %310 = vperm.xlu0 %309, %v259
        %v311 = vpop.permute.xlu0 %310
        %314 = vset.pattern.permute.xlu0 0
        %315 = vperm.xlu0 %314, %v260
        %v316 = vpop.permute.xlu0 %315
        %319 = vset.pattern.permute.xlu0 0
        %320 = vperm.xlu0 %319, %v261
        %v321 = vpop.permute.xlu0 %320
        %324 = vset.pattern.permute.xlu0 0
        %325 = vperm.xlu0 %324, %v262
        %v326 = vpop.permute.xlu0 %325
        %329 = vset.pattern.permute.xlu0 0
        %330 = vperm.xlu0 %329, %v263
        %v331 = vpop.permute.xlu0 %330
        %334 = vset.pattern.permute.xlu0 0
        %335 = vperm.xlu0 %334, %v264
        %v336 = vpop.permute.xlu0 %335
        %339 = vset.pattern.permute.xlu0 0
        %340 = vperm.xlu0 %339, %v265
        %v341 = vpop.permute.xlu0 %340
        %344 = vset.pattern.permute.xlu0 0
        %345 = vperm.xlu0 %344, %v266
        %v346 = vpop.permute.xlu0 %345
        %v348 = vlaneseq
        %v349 = vshrl.u32 %v348, 7
        %v350 = vsub.s32 0, %v349
        %v351 = vrot.slane %v267, %v350
        %v352 = vmul.f32 %v271, %v351
        %v353 = vmul.f32 %v276, %v351
        %v354 = vmul.f32 %v281, %v351
        %v355 = vmul.f32 %v286, %v351
        %v356 = vmul.f32 %v291, %v351
        %v357 = vmul.f32 %v296, %v351
        %v358 = vmul.f32 %v301, %v351
        %v359 = vmul.f32 %v306, %v351
        %v360 = vmul.f32 %v311, %v351
        %v361 = vmul.f32 %v316, %v351
        %v362 = vmul.f32 %v321, %v351
        %v363 = vmul.f32 %v326, %v351
        %v364 = vmul.f32 %v331, %v351
        %v365 = vmul.f32 %v336, %v351
        %v366 = vmul.f32 %v341, %v351
        %v367 = vmul.f32 %v346, %v351
        %368 = vset.pattern.permute.xlu0 1
        %369 = vperm.xlu0 %368, %v251
        %v370 = vpop.permute.xlu0 %369
        %372 = vset.pattern.permute.xlu0 1
        %373 = vperm.xlu0 %372, %v252
        %v374 = vpop.permute.xlu0 %373
        %376 = vset.pattern.permute.xlu0 1
        %377 = vperm.xlu0 %376, %v253
        %v378 = vpop.permute.xlu0 %377
        %380 = vset.pattern.permute.xlu0 1
        %381 = vperm.xlu0 %380, %v254
        %v382 = vpop.permute.xlu0 %381
        %384 = vset.pattern.permute.xlu0 1
        %385 = vperm.xlu0 %384, %v255
        %v386 = vpop.permute.xlu0 %385
        %388 = vset.pattern.permute.xlu0 1
        %389 = vperm.xlu0 %388, %v256
        %v390 = vpop.permute.xlu0 %389
        %392 = vset.pattern.permute.xlu0 1
        %393 = vperm.xlu0 %392, %v257
        %v394 = vpop.permute.xlu0 %393
        %396 = vset.pattern.permute.xlu0 1
        %397 = vperm.xlu0 %396, %v258
        %v398 = vpop.permute.xlu0 %397
        %400 = vset.pattern.permute.xlu0 1
        %401 = vperm.xlu0 %400, %v259
        %v402 = vpop.permute.xlu0 %401
        %404 = vset.pattern.permute.xlu0 1
        %405 = vperm.xlu0 %404, %v260
        %v406 = vpop.permute.xlu0 %405
        %408 = vset.pattern.permute.xlu0 1
        %409 = vperm.xlu0 %408, %v261
        %v410 = vpop.permute.xlu0 %409
        %412 = vset.pattern.permute.xlu0 1
        %413 = vperm.xlu0 %412, %v262
        %v414 = vpop.permute.xlu0 %413
        %416 = vset.pattern.permute.xlu0 1
        %417 = vperm.xlu0 %416, %v263
        %v418 = vpop.permute.xlu0 %417
        %420 = vset.pattern.permute.xlu0 1
        %421 = vperm.xlu0 %420, %v264
        %v422 = vpop.permute.xlu0 %421
        %424 = vset.pattern.permute.xlu0 1
        %425 = vperm.xlu0 %424, %v265
        %v426 = vpop.permute.xlu0 %425
        %428 = vset.pattern.permute.xlu0 1
        %429 = vperm.xlu0 %428, %v266
        %v430 = vpop.permute.xlu0 %429
        %v432 = vlaneseq
        %v433 = vshrl.u32 %v432, 7
        %v434 = vsub.s32 1, %v433
        %v435 = vrot.slane %v267, %v434
        %v436 = vmul.f32 %v370, %v435
        %v437 = vmul.f32 %v374, %v435
        %v438 = vmul.f32 %v378, %v435
        %v439 = vmul.f32 %v382, %v435
        %v440 = vmul.f32 %v386, %v435
        %v441 = vmul.f32 %v390, %v435
        %v442 = vmul.f32 %v394, %v435
        %v443 = vmul.f32 %v398, %v435
        %v444 = vmul.f32 %v402, %v435
        %v445 = vmul.f32 %v406, %v435
        %v446 = vmul.f32 %v410, %v435
        %v447 = vmul.f32 %v414, %v435
        %v448 = vmul.f32 %v418, %v435
        %v449 = vmul.f32 %v422, %v435
        %v450 = vmul.f32 %v426, %v435
        %v451 = vmul.f32 %v430, %v435
        %v452 = vadd.f32 %v352, %v436
        %v453 = vadd.f32 %v353, %v437
        %v454 = vadd.f32 %v354, %v438
        %v455 = vadd.f32 %v355, %v439
        %v456 = vadd.f32 %v356, %v440
        %v457 = vadd.f32 %v357, %v441
        %v458 = vadd.f32 %v358, %v442
        %v459 = vadd.f32 %v359, %v443
        %v460 = vadd.f32 %v360, %v444
        %v461 = vadd.f32 %v361, %v445
        %v462 = vadd.f32 %v362, %v446
        %v463 = vadd.f32 %v363, %v447
        %v464 = vadd.f32 %v364, %v448
        %v465 = vadd.f32 %v365, %v449
        %v466 = vadd.f32 %v366, %v450
        %v467 = vadd.f32 %v367, %v451
        %468 = vset.pattern.permute.xlu0 2
        %469 = vperm.xlu0 %468, %v251
        %v470 = vpop.permute.xlu0 %469
        %472 = vset.pattern.permute.xlu0 2
        %473 = vperm.xlu0 %472, %v252
        %v474 = vpop.permute.xlu0 %473
        %476 = vset.pattern.permute.xlu0 2
        %477 = vperm.xlu0 %476, %v253
        %v478 = vpop.permute.xlu0 %477
        %480 = vset.pattern.permute.xlu0 2
        %481 = vperm.xlu0 %480, %v254
        %v482 = vpop.permute.xlu0 %481
        %484 = vset.pattern.permute.xlu0 2
        %485 = vperm.xlu0 %484, %v255
        %v486 = vpop.permute.xlu0 %485
        %488 = vset.pattern.permute.xlu0 2
        %489 = vperm.xlu0 %488, %v256
        %v490 = vpop.permute.xlu0 %489
        %492 = vset.pattern.permute.xlu0 2
        %493 = vperm.xlu0 %492, %v257
        %v494 = vpop.permute.xlu0 %493
        %496 = vset.pattern.permute.xlu0 2
        %497 = vperm.xlu0 %496, %v258
        %v498 = vpop.permute.xlu0 %497
        %500 = vset.pattern.permute.xlu0 2
        %501 = vperm.xlu0 %500, %v259
        %v502 = vpop.permute.xlu0 %501
        %504 = vset.pattern.permute.xlu0 2
        %505 = vperm.xlu0 %504, %v260
        %v506 = vpop.permute.xlu0 %505
        %508 = vset.pattern.permute.xlu0 2
        %509 = vperm.xlu0 %508, %v261
        %v510 = vpop.permute.xlu0 %509
        %512 = vset.pattern.permute.xlu0 2
        %513 = vperm.xlu0 %512, %v262
        %v514 = vpop.permute.xlu0 %513
        %516 = vset.pattern.permute.xlu0 2
        %517 = vperm.xlu0 %516, %v263
        %v518 = vpop.permute.xlu0 %517
        %520 = vset.pattern.permute.xlu0 2
        %521 = vperm.xlu0 %520, %v264
        %v522 = vpop.permute.xlu0 %521
        %524 = vset.pattern.permute.xlu0 2
        %525 = vperm.xlu0 %524, %v265
        %v526 = vpop.permute.xlu0 %525
        %528 = vset.pattern.permute.xlu0 2
        %529 = vperm.xlu0 %528, %v266
        %v530 = vpop.permute.xlu0 %529
        %v532 = vlaneseq
        %v533 = vshrl.u32 %v532, 7
        %v534 = vsub.s32 2, %v533
        %v535 = vrot.slane %v267, %v534
        %v536 = vmul.f32 %v470, %v535
        %v537 = vmul.f32 %v474, %v535
        %v538 = vmul.f32 %v478, %v535
        %v539 = vmul.f32 %v482, %v535
        %v540 = vmul.f32 %v486, %v535
        %v541 = vmul.f32 %v490, %v535
        %v542 = vmul.f32 %v494, %v535
        %v543 = vmul.f32 %v498, %v535
        %v544 = vmul.f32 %v502, %v535
        %v545 = vmul.f32 %v506, %v535
        %v546 = vmul.f32 %v510, %v535
        %v547 = vmul.f32 %v514, %v535
        %v548 = vmul.f32 %v518, %v535
        %v549 = vmul.f32 %v522, %v535
        %v550 = vmul.f32 %v526, %v535
        %v551 = vmul.f32 %v530, %v535
        %v552 = vadd.f32 %v452, %v536
        %v553 = vadd.f32 %v453, %v537
        %v554 = vadd.f32 %v454, %v538
        %v555 = vadd.f32 %v455, %v539
        %v556 = vadd.f32 %v456, %v540
        %v557 = vadd.f32 %v457, %v541
        %v558 = vadd.f32 %v458, %v542
        %v559 = vadd.f32 %v459, %v543
        %v560 = vadd.f32 %v460, %v544
        %v561 = vadd.f32 %v461, %v545
        %v562 = vadd.f32 %v462, %v546
        %v563 = vadd.f32 %v463, %v547
        %v564 = vadd.f32 %v464, %v548
        %v565 = vadd.f32 %v465, %v549
        %v566 = vadd.f32 %v466, %v550
        %v567 = vadd.f32 %v467, %v551
        %v568 = vld [vmem:[%s2] sm:$0x1]
        %v570 = vlaneseq
        %v571 = vshrl.u32 %v570, 7
        %v572 = vsub.s32 0, %v571
        %v573 = vrot.slane %v568, %v572
        %v575 = vadd.f32 %v552, %v573
        %v576 = vadd.f32 %v553, %v573
        %v577 = vadd.f32 %v554, %v573
        %v578 = vadd.f32 %v555, %v573
        %v579 = vadd.f32 %v556, %v573
        %v580 = vadd.f32 %v557, %v573
        %v581 = vadd.f32 %v558, %v573
        %v582 = vadd.f32 %v559, %v573
        %v583 = vadd.f32 %v560, %v573
        %v584 = vadd.f32 %v561, %v573
        %v585 = vadd.f32 %v562, %v573
        %v586 = vadd.f32 %v563, %v573
        %v587 = vadd.f32 %v564, %v573
        %v588 = vadd.f32 %v565, %v573
        %v589 = vadd.f32 %v566, %v573
        %v590 = vadd.f32 %v567, %v573
        %v591 = vmax.f32 %v575, 0.0
        %v592 = vmax.f32 %v576, 0.0
        %v593 = vmax.f32 %v577, 0.0
        %v594 = vmax.f32 %v578, 0.0
        %v595 = vmax.f32 %v579, 0.0
        %v596 = vmax.f32 %v580, 0.0
        %v597 = vmax.f32 %v581, 0.0
        %v598 = vmax.f32 %v582, 0.0
        %v599 = vmax.f32 %v583, 0.0
        %v600 = vmax.f32 %v584, 0.0
        %v601 = vmax.f32 %v585, 0.0
        %v602 = vmax.f32 %v586, 0.0
        %v603 = vmax.f32 %v587, 0.0
        %v604 = vmax.f32 %v588, 0.0
        %v605 = vmax.f32 %v589, 0.0
        %v606 = vmax.f32 %v590, 0.0
        %v607 = vpack.c.bf16 %v592, %v591
        %v608 = vpack.c.bf16 %v594, %v593
        %v609 = vpack.c.bf16 %v596, %v595
        %v610 = vpack.c.bf16 %v598, %v597
        %v611 = vpack.c.bf16 %v600, %v599
        %v612 = vpack.c.bf16 %v602, %v601
        %v613 = vpack.c.bf16 %v604, %v603
        %v614 = vpack.c.bf16 %v606, %v605
        %v615 = vld [vmem:[%s3] sm:$0xf]
        %v616 = vld [vmem:[%s3 + $0x4] sm:$0xf]
        %v617 = vld [vmem:[%s3 + $0x8] sm:$0xf]
        %v618 = vld [vmem:[%s3 + $0xc] sm:$0xf]
        %v619 = vld [vmem:[%s4] sm:$0x1]
        %v621 = vlaneseq
        %v622 = vshrl.u32 %v621, 7
        %v623 = vsub.s32 0, %v622
        %v624 = vrot.slane %v619, %v623
        %v630 = vunpack.c.l.b16 %v615
        %v631 = vunpack.c.l.b16 %v616
        %v632 = vunpack.c.l.b16 %v617
        %v633 = vunpack.c.l.b16 %v618
        %v634 = vpack.c.b16 %v631, %v630
        %v635 = vpack.c.b16 %v633, %v632
        %vm638 = vcmask 261120
        %v640 = vsel %vm638, %v607, 0
        %v643 = vsel %vm638, %v608, 0
        %v646 = vsel %vm638, %v609, 0
        %v649 = vsel %vm638, %v610, 0
        %v652 = vsel %vm638, %v611, 0
        %v655 = vsel %vm638, %v612, 0
        %v658 = vsel %vm638, %v613, 0
        %v661 = vsel %vm638, %v614, 0
        %663 = vmatprep.subr.bf16.mxu0 0
        %664 = vmatpush1.bf16.msra.mxu0 %v634
        %665 = vmatprep.subr.bf16.mxu0 0
        %666 = vmatpush1.bf16.msra.mxu0 %v635
        %667 = vmatprep.subr.bf16.mxu0 0
        %668 = vmatpush1.bf16.msra.mxu0 0
        %669 = vmatprep.subr.bf16.mxu0 0
        %670 = vmatpush1.bf16.msra.mxu0 0
        %671 = vmatprep.subr.bf16.mxu0 0
        %672 = vmatpush1.bf16.msra.mxu0 0
        %673 = vmatprep.subr.bf16.mxu0 0
        %674 = vmatpush1.bf16.msra.mxu0 0
        %675 = vmatprep.subr.bf16.mxu0 0
        %676 = vmatpush1.bf16.msra.mxu0 0
        %677 = vmatprep.subr.bf16.mxu0 0
        %678 = vmatpush1.bf16.msra.mxu0 0
        %679 = vmatprep.subr.bf16.mxu0 0
        %680 = vmatpush1.bf16.msra.mxu0 0
        %681 = vmatprep.subr.bf16.mxu0 0
        %682 = vmatpush1.bf16.msra.mxu0 0
        %683 = vmatprep.subr.bf16.mxu0 0
        %684 = vmatpush1.bf16.msra.mxu0 0
        %685 = vmatprep.subr.bf16.mxu0 0
        %686 = vmatpush1.bf16.msra.mxu0 0
        %687 = vmatprep.subr.bf16.mxu0 0
        %688 = vmatpush1.bf16.msra.mxu0 0
        %689 = vmatprep.subr.bf16.mxu0 0
        %690 = vmatpush1.bf16.msra.mxu0 0
        %691 = vmatprep.subr.bf16.mxu0 0
        %692 = vmatpush1.bf16.msra.mxu0 0
        %693 = vmatprep.subr.bf16.mxu0 0
        %694 = vmatpush1.bf16.msra.mxu0 0
        %695 = vmatprep.mubr.bf16.mxu0 0
        %696 = vmatmul.mubr.bf16.gmra.mrb[0].mxu0 %v640
        %v697 = vpop.f32.mrb[0].mxu0
        %v698 = vadd.f32 %v624, %v697
        %v699 = vpop.f32.mrb[0].mxu0
        %v700 = vpop.f32.mrb[0].mxu0
        %v701 = vadd.f32 %v624, %v700
        %v702 = vpop.f32.mrb[0].mxu0
        %703 = vmatprep.mubr.bf16.mxu0 0
        %704 = vmatmul.mubr.bf16.gmra.mrb[0].mxu0 %v643
        %v705 = vpop.f32.mrb[0].mxu0
        %v706 = vadd.f32 %v624, %v705
        %v707 = vpop.f32.mrb[0].mxu0
        %v708 = vpop.f32.mrb[0].mxu0
        %v709 = vadd.f32 %v624, %v708
        %v710 = vpop.f32.mrb[0].mxu0
        %711 = vmatprep.mubr.bf16.mxu0 0
        %712 = vmatmul.mubr.bf16.gmra.mrb[0].mxu0 %v646
        %v713 = vpop.f32.mrb[0].mxu0
        %v714 = vadd.f32 %v624, %v713
        %v715 = vpop.f32.mrb[0].mxu0
        %v716 = vpop.f32.mrb[0].mxu0
        %v717 = vadd.f32 %v624, %v716
        %v718 = vpop.f32.mrb[0].mxu0
        %719 = vmatprep.mubr.bf16.mxu0 0
        %720 = vmatmul.mubr.bf16.gmra.mrb[0].mxu0 %v649
        %v721 = vpop.f32.mrb[0].mxu0
        %v722 = vadd.f32 %v624, %v721
        %v723 = vpop.f32.mrb[0].mxu0
        %v724 = vpop.f32.mrb[0].mxu0
        %v725 = vadd.f32 %v624, %v724
        %v726 = vpop.f32.mrb[0].mxu0
        %727 = vmatprep.mubr.bf16.mxu0 0
        %728 = vmatmul.mubr.bf16.gmra.mrb[0].mxu0 %v652
        %v729 = vpop.f32.mrb[0].mxu0
        %v730 = vadd.f32 %v624, %v729
        %v731 = vpop.f32.mrb[0].mxu0
        %v732 = vpop.f32.mrb[0].mxu0
        %v733 = vadd.f32 %v624, %v732
        %v734 = vpop.f32.mrb[0].mxu0
        %735 = vmatprep.mubr.bf16.mxu0 0
        %736 = vmatmul.mubr.bf16.gmra.mrb[0].mxu0 %v655
        %v737 = vpop.f32.mrb[0].mxu0
        %v738 = vadd.f32 %v624, %v737
        %v739 = vpop.f32.mrb[0].mxu0
        %v740 = vpop.f32.mrb[0].mxu0
        %v741 = vadd.f32 %v624, %v740
        %v742 = vpop.f32.mrb[0].mxu0
        %743 = vmatprep.mubr.bf16.mxu0 0
        %744 = vmatmul.mubr.bf16.gmra.mrb[0].mxu0 %v658
        %v745 = vpop.f32.mrb[0].mxu0
        %v746 = vadd.f32 %v624, %v745
        %v747 = vpop.f32.mrb[0].mxu0
        %v748 = vpop.f32.mrb[0].mxu0
        %v749 = vadd.f32 %v624, %v748
        %v750 = vpop.f32.mrb[0].mxu0
        %751 = vmatprep.mubr.bf16.mxu0 0
        %752 = vmatmul.mubr.bf16.gmra.mrb[0].mxu0 %v661
        %v753 = vpop.f32.mrb[0].mxu0
        %v754 = vadd.f32 %v624, %v753
        %v755 = vpop.f32.mrb[0].mxu0
        %v756 = vpop.f32.mrb[0].mxu0
        %v757 = vadd.f32 %v624, %v756
        %v758 = vpop.f32.mrb[0].mxu0
        %759 = vdwg.mxu0
        %v760 = vlaneseq
        %v761 = vshrl.u32 %v760, 7
        %v762 = vadd.s32 %v761, 8
        %v763 = vadd.s32 %v761, 16
        %v764 = vadd.s32 %v761, 24
        %v765 = vadd.s32 %v761, 32
        %v766 = vadd.s32 %v761, 40
        %v767 = vadd.s32 %v761, 48
        %v768 = vadd.s32 %v761, 56
        %v769 = vadd.s32 %v761, 64
        %v770 = vadd.s32 %v761, 72
        %v771 = vadd.s32 %v761, 80
        %v772 = vadd.s32 %v761, 88
        %v773 = vadd.s32 %v761, 96
        %v774 = vadd.s32 %v761, 104
        %v775 = vadd.s32 %v761, 112
        %v776 = vadd.s32 %v761, 120
        %s777 = smul.u32 %s24, 128
        %v778 = vstv %s777
        %v779 = vadd.s32 %v761, %v778
        %v780 = vadd.s32 %v762, %v778
        %v781 = vadd.s32 %v763, %v778
        %v782 = vadd.s32 %v764, %v778
        %v783 = vadd.s32 %v765, %v778
        %v784 = vadd.s32 %v766, %v778
        %v785 = vadd.s32 %v767, %v778
        %v786 = vadd.s32 %v768, %v778
        %v787 = vadd.s32 %v769, %v778
        %v788 = vadd.s32 %v770, %v778
        %v789 = vadd.s32 %v771, %v778
        %v790 = vadd.s32 %v772, %v778
        %v791 = vadd.s32 %v773, %v778
        %v792 = vadd.s32 %v774, %v778
        %v793 = vadd.s32 %v775, %v778
        %v794 = vadd.s32 %v776, %v778
        %vm795 = vcmp.lt.s32.totalorder %v779, 512
        %vm796 = vcmp.lt.s32.totalorder %v780, 512
        %vm797 = vcmp.lt.s32.totalorder %v781, 512
        %vm798 = vcmp.lt.s32.totalorder %v782, 512
        %vm799 = vcmp.lt.s32.totalorder %v783, 512
        %vm800 = vcmp.lt.s32.totalorder %v784, 512
        %vm801 = vcmp.lt.s32.totalorder %v785, 512
        %vm802 = vcmp.lt.s32.totalorder %v786, 512
        %vm803 = vcmp.lt.s32.totalorder %v787, 512
        %vm804 = vcmp.lt.s32.totalorder %v788, 512
        %vm805 = vcmp.lt.s32.totalorder %v789, 512
        %vm806 = vcmp.lt.s32.totalorder %v790, 512
        %vm807 = vcmp.lt.s32.totalorder %v791, 512
        %vm808 = vcmp.lt.s32.totalorder %v792, 512
        %vm809 = vcmp.lt.s32.totalorder %v793, 512
        %vm810 = vcmp.lt.s32.totalorder %v794, 512
        %v811 = vsel %vm795, 1, 0
        %v812 = vsel %vm796, 1, 0
        %v813 = vsel %vm797, 1, 0
        %v814 = vsel %vm798, 1, 0
        %v815 = vsel %vm799, 1, 0
        %v816 = vsel %vm800, 1, 0
        %v817 = vsel %vm801, 1, 0
        %v818 = vsel %vm802, 1, 0
        %v819 = vsel %vm803, 1, 0
        %v820 = vsel %vm804, 1, 0
        %v821 = vsel %vm805, 1, 0
        %v822 = vsel %vm806, 1, 0
        %v823 = vsel %vm807, 1, 0
        %v824 = vsel %vm808, 1, 0
        %v825 = vsel %vm809, 1, 0
        %v826 = vsel %vm810, 1, 0
        %vm827 = vcmp.eq.s32.totalorder %v811, 1
        %vm828 = vcmp.eq.s32.totalorder %v812, 1
        %vm829 = vcmp.eq.s32.totalorder %v813, 1
        %vm830 = vcmp.eq.s32.totalorder %v814, 1
        %vm831 = vcmp.eq.s32.totalorder %v815, 1
        %vm832 = vcmp.eq.s32.totalorder %v816, 1
        %vm833 = vcmp.eq.s32.totalorder %v817, 1
        %vm834 = vcmp.eq.s32.totalorder %v818, 1
        %vm835 = vcmp.eq.s32.totalorder %v819, 1
        %vm836 = vcmp.eq.s32.totalorder %v820, 1
        %vm837 = vcmp.eq.s32.totalorder %v821, 1
        %vm838 = vcmp.eq.s32.totalorder %v822, 1
        %vm839 = vcmp.eq.s32.totalorder %v823, 1
        %vm840 = vcmp.eq.s32.totalorder %v824, 1
        %vm841 = vcmp.eq.s32.totalorder %v825, 1
        %vm842 = vcmp.eq.s32.totalorder %v826, 1
        %v843 = vsel %vm827, %v698, -inf
        %v844 = vsel %vm828, %v701, -inf
        %v845 = vsel %vm829, %v706, -inf
        %v846 = vsel %vm830, %v709, -inf
        %v847 = vsel %vm831, %v714, -inf
        %v848 = vsel %vm832, %v717, -inf
        %v849 = vsel %vm833, %v722, -inf
        %v850 = vsel %vm834, %v725, -inf
        %v851 = vsel %vm835, %v730, -inf
        %v852 = vsel %vm836, %v733, -inf
        %v853 = vsel %vm837, %v738, -inf
        %v854 = vsel %vm838, %v741, -inf
        %v855 = vsel %vm839, %v746, -inf
        %v856 = vsel %vm840, %v749, -inf
        %v857 = vsel %vm841, %v754, -inf
        %v858 = vsel %vm842, %v757, -inf
        %v859 = vsel %vm638, %v843, -inf
        %v860 = vsel %vm638, %v844, -inf
        %v861 = vsel %vm638, %v845, -inf
        %v862 = vsel %vm638, %v846, -inf
        %v863 = vsel %vm638, %v847, -inf
        %v864 = vmax.f32 %v859, %v863
        %v865 = vsel %vm638, %v848, -inf
        %v866 = vmax.f32 %v860, %v865
        %v867 = vsel %vm638, %v849, -inf
        %v868 = vmax.f32 %v861, %v867
        %v869 = vsel %vm638, %v850, -inf
        %v870 = vmax.f32 %v862, %v869
        %v871 = vsel %vm638, %v851, -inf
        %v872 = vmax.f32 %v864, %v871
        %v873 = vsel %vm638, %v852, -inf
        %v874 = vmax.f32 %v866, %v873
        %v875 = vsel %vm638, %v853, -inf
        %v876 = vmax.f32 %v868, %v875
        %v877 = vsel %vm638, %v854, -inf
        %v878 = vmax.f32 %v870, %v877
        %v879 = vsel %vm638, %v855, -inf
        %v880 = vmax.f32 %v872, %v879
        %v881 = vsel %vm638, %v856, -inf
        %v882 = vmax.f32 %v874, %v881
        %v883 = vsel %vm638, %v857, -inf
        %v884 = vmax.f32 %v876, %v883
        %v885 = vsel %vm638, %v858, -inf
        %v886 = vmax.f32 %v878, %v885
        %v887 = vmax.f32 %v880, %v882
        %v888 = vmax.f32 %v884, %v886
        %v889 = vmax.f32 %v887, %v888
        %v890 = vrot.slane %v889, 4
        %v891 = vmax.f32 %v889, %v890
        %v892 = vrot.slane %v891, 2
        %v893 = vmax.f32 %v891, %v892
        %v894 = vrot.slane %v893, 1
        %v895 = vmax.f32 %v893, %v894
        %p896 = scmp.eq.s32.totalorder %s24, 0
        // Predicated region
        $region41: #{tpu_custom_call.1} parent=39 // pred_check
          %p897 = pneg %p896
        $region42: #{tpu_custom_call.1} parent=39 // pred_check_branch
          %899 = sbr.rel (%p897) target = $region44
        $region43: #{tpu_custom_call.1} parent=39 // pred_region
          %vm900 = vcmask 253952
          %901 = vst.msk [vmem:[%s239] sm:$0x1] %vm900, %v895
        $region44: #{tpu_custom_call.1} parent=39 // pred_fallthru
          _
        %p902 = scmp.gt.s32.totalorder %s24, 0
        // Predicated region
        $region45: #{tpu_custom_call.1} parent=39 // pred_check
          %p903 = pneg %p902
        $region46: #{tpu_custom_call.1} parent=39 // pred_check_branch
          %905 = sbr.rel (%p903) target = $region48
        $region47: #{tpu_custom_call.1} parent=39 // pred_region
          %v906 = vld [vmem:[%s239] sm:$0x1]
          %v907 = vmax.f32 %v906, %v895
          %vm908 = vcmask 253952
          %909 = vst.msk [vmem:[%s239] sm:$0x1] %vm908, %v907
        $region48: #{tpu_custom_call.1} parent=39 // pred_fallthru
          _
        %s910 = sand.u32 %s151, 1
        %s911 = scalar_lea.sflag [#allocation3], %s910
        %s912 = sand.u32 %s151, 1
        %s913 = scalar_lea.vmem [#allocation2], %s912
        // Predicated region
        $region49: #{tpu_custom_call.1} parent=39 // pred_check
          %p914 = pneg %p161
        $region50: #{tpu_custom_call.1} parent=39 // pred_check_branch
          %916 = sbr.rel (%p914) target = $region52
        $region51: #{tpu_custom_call.1} parent=39 // pred_region
          %s918 = ssub.s32 16, 16
          %919 = vsyncadd %s911, %s918
          %s920 = smul.addr %s23, 16
          %s921 = scalar_lea.hbm %s5, %s920
          %s923 = sshll.u32 %s913, 4
          %s924 = int_to_ptr.vmem [resolvable:$true] %s923
          %926 = dma.vmem_to_hbm [thread:$0]  %s924, 16, %s921, %s911
        $region52: #{tpu_custom_call.1} parent=39 // pred_fallthru
          _
      $region40: #{tpu_custom_call.1} parent=5 // pred_fallthru
        _
      %p927 = scmp.le.s32.totalorder 2, %s14
      // Predicated region
      $region53: #{tpu_custom_call.1} parent=5 // pred_check
        %p928 = pneg %p927
      $region54: #{tpu_custom_call.1} parent=5 // pred_check_branch
        %930 = sbr.rel (%p928) target = $region56
      $region55: #{tpu_custom_call.1} parent=5 // pred_region
        %s931 = ssub.s32 %s14, 2
        // Predicated region
        $region57: #{tpu_custom_call.1} parent=55 // pred_check
          %p932 = pneg %p167
        $region58: #{tpu_custom_call.1} parent=55 // pred_check_branch
          %934 = sbr.rel (%p932) target = $region60
        $region59: #{tpu_custom_call.1} parent=55 // pred_region
          %s935 = sand.u32 %s152, 1
          %s936 = scalar_lea.sflag [#allocation3], %s935
          %s937 = sand.u32 %s152, 1
          %s938 = scalar_lea.vmem [#allocation2], %s937
          %939 = dma.done %s936, 16
        $region60: #{tpu_custom_call.1} parent=55 // pred_fallthru
          _
      $region56: #{tpu_custom_call.1} parent=5 // pred_fallthru
        _
    $region6: #{tpu_custom_call.1} parent=1 // loop_footer
      %s18 = sadd.s32 1, %s14
    $region7: #{tpu_custom_call.1} parent=1 // loop_footer_branch
      %13 = sbr.rel target = $region3
    $region8: #{tpu_custom_call.1} parent=1 // loop_exit
      _
    %940 = vsyncpa [#allocation3], 1
    %s941 = scalar_lea.sflag [#allocation3], 1
    %942 = vsyncpa %s941, 1

</llo_original>
